<compile_context>
chip_gen: v7x
topology: tpu7x:2x2x1
jax: 0.10.0
libtpu: 0.0.40
codegen_flags: <defaults>
</compile_context>

<pallas_src>
import functools

import numpy as np
import jax
import jax.numpy as jnp
from jax import lax
from jax.experimental import pallas as pl
from jax.experimental.pallas import tpu as pltpu


def _round_up(x, m):
    return ((x + m - 1) // m) * m


def alignment_head_kernel(x_ref, w1_ref, b1_ref, w2_ref, b2_ref, w3_ref, b3_ref, vw_ref,
                          out_ref, *, value_dim):
    """Fused 3-layer MLP head + sigmoid + weighted value reduction.

    Layer 1 runs in f32 (K is tiny); layers 2/3 feed bf16 operands to the MXU and
    accumulate in f32. The output block packs [scores(0..V-1) | overall(lane V) | zeros]
    along the lane dimension so there is a single store / output DMA stream per step.
    """
    x = x_ref[...]                                                     # (tb, D)   f32
    h1 = jnp.dot(x, w1_ref[...], preferred_element_type=jnp.float32) + b1_ref[...]
    h1 = jnp.maximum(h1, 0.0).astype(jnp.bfloat16)                     # (tb, H1)  in-kernel bf16 cast
    h2 = jnp.dot(h1, w2_ref[...], preferred_element_type=jnp.float32) + b2_ref[...]
    h2 = jnp.maximum(h2, 0.0).astype(jnp.bfloat16)                     # (tb, H2)
    z = jnp.dot(h2, w3_ref[...], preferred_element_type=jnp.float32) + b3_ref[...]   # (tb, OUT_W)
    s = jax.nn.sigmoid(z)                 # padded lanes give sigmoid(0)=0.5; masked below
    # get_overall_alignment fused: value weights are zero on padded lanes.
    overall = jnp.sum(s * vw_ref[...], axis=-1, keepdims=True)         # (tb, 1)
    lane = lax.broadcasted_iota(jnp.int32, s.shape, 1)
    out_ref[...] = jnp.where(lane == value_dim, overall,
                             jnp.where(lane < value_dim, s, 0.0)).astype(out_ref.dtype)


def init_linear(key, fan_in, fan_out):
    """nn.Linear-style init: uniform(-1/sqrt(fan_in), 1/sqrt(fan_in)); W stored as [in, out]."""
    kw, kb = jax.random.split(key)
    bound = 1.0 / np.sqrt(fan_in)
    w = jax.random.uniform(kw, (fan_in, fan_out), jnp.float32, -bound, bound)
    b = jax.random.uniform(kb, (1, fan_out), jnp.float32, -bound, bound)
    return w, b


def make_alignment_head_params(key, input_dim, value_weights, hidden1=256, hidden2=128):
    """Build kernel-ready parameters ONCE (persistent bf16 weights, lane-padded final layer).

    value_weights are normalized here (ValueCenter semantics) so `overall` is a weighted
    average even if the caller passes unnormalized weights.
    """
    value_weights = np.asarray(value_weights, np.float32)
    value_weights = value_weights / value_weights.sum()
    value_dim = int(value_weights.shape[0])
    out_w = _round_up(value_dim + 1, 8)   # lanes 0..V-1 scores, lane V overall, rest zero-pad

    k1, k2, k3 = jax.random.split(key, 3)
    w1, b1 = init_linear(k1, input_dim, hidden1)
    w2, b2 = init_linear(k2, hidden1, hidden2)
    w3, b3 = init_linear(k3, hidden2, value_dim)

    w3p = jnp.zeros((hidden2, out_w), jnp.float32).at[:, :value_dim].set(w3)
    b3p = jnp.zeros((1, out_w), jnp.float32).at[:, :value_dim].set(b3)
    vwp = jnp.zeros((1, out_w), jnp.float32).at[0, :value_dim].set(jnp.asarray(value_weights))

    return dict(
        w1=w1,                                # f32: layer-1 kept full precision (K = input_dim is tiny)
        b1=b1,
        w2=w2.astype(jnp.bfloat16),           # persistent bf16 -> no per-call cast / extra HBM pass
        b2=b2,
        w3=w3p.astype(jnp.bfloat16),          # lane-padded final layer
        b3=b3p,
        vw=vwp,
        value_dim=value_dim,
        out_width=out_w,
    )


def _pick_batch_tile(batch):
    """Batch-tile heuristic. Sweep 256-1024 per generation for production workloads."""
    bp8 = _round_up(batch, 8)             # sublane multiple: minimal padding for small B
    if bp8 <= 512:
        return bp8                        # one grid step, no redundant MXU rows
    # Large B: 256-row multiples fill the v6e/v7x MXU M dim (128-multiples native on v5e)
    # and give >=2 grid steps so the "parallel" axis shards across v7x's two TensorCores.
    return 512 if bp8 >= 1024 else 256


def alignment_head_forward(x, params, *, tb=None):
    """x: [B, D] float32 embeddings. Returns (scores [B, V] in (0,1), overall [B])."""
    B, D = x.shape
    w1, b1, w2, b2, w3, b3, vw = (params[k] for k in ("w1", "b1", "w2", "b2", "w3", "b3", "vw"))
    V = params["value_dim"]
    out_w = params["out_width"]
    H1 = w1.shape[1]
    H2 = w2.shape[1]

    if tb is None:
        tb = _pick_batch_tile(B)
    n_tiles = pl.cdiv(B, tb)
    Bp = n_tiles * tb
    if Bp != B:                            # pad only when needed (no-op for aligned B)
        x = jnp.pad(x, ((0, Bp - B), (0, 0)))

    # Single-buffer the VMEM-resident weights only when they are big enough to matter
    # (production D/H on v7x's 64 MiB VMEM); tiny shapes keep the default pipeline mode.
    weight_bytes = w1.size * 4 + w2.size * 2 + w3.size * 2
    wmode = pl.Buffered(1) if weight_bytes > (2 << 20) else None

    cost = pl.CostEstimate(
        flops=2 * Bp * (D * H1 + H1 * H2 + H2 * out_w),
        transcendentals=Bp * out_w,                                   # sigmoid
        bytes_accessed=(Bp * D * 4 + Bp * out_w * 4
                        + D * H1 * 4 + (H1 * H2 + H2 * out_w) * 2
                        + (H1 + H2 + 2 * out_w) * 4),
    )

    out = pl.pallas_call(
        functools.partial(alignment_head_kernel, value_dim=V),
        out_shape=jax.ShapeDtypeStruct((Bp, out_w), jnp.float32),
        grid_spec=pltpu.PrefetchScalarGridSpec(
            num_scalar_prefetch=0,
            grid=(n_tiles,),
            in_specs=[
                pl.BlockSpec((tb, D), lambda i: (i, 0)),                           # x tile over batch
                pl.BlockSpec((D, H1), lambda i: (0, 0), pipeline_mode=wmode),      # W1 (VMEM-resident)
                pl.BlockSpec((1, H1), lambda i: (0, 0)),                           # b1
                pl.BlockSpec((H1, H2), lambda i: (0, 0), pipeline_mode=wmode),     # W2
                pl.BlockSpec((1, H2), lambda i: (0, 0)),                           # b2
                pl.BlockSpec((H2, out_w), lambda i: (0, 0), pipeline_mode=wmode),  # W3 (lane-padded)
                pl.BlockSpec((1, out_w), lambda i: (0, 0)),                        # b3
                pl.BlockSpec((1, out_w), lambda i: (0, 0)),                        # value weights
            ],
            out_specs=pl.BlockSpec((tb, out_w), lambda i: (i, 0)),                 # merged output
        ),
        compiler_params=pltpu.CompilerParams(dimension_semantics=("parallel",)),
        cost_estimate=cost,
    )(x, w1, b1, w2, b2, w3, b3, vw)

    return out[:B, :V], out[:B, V]


if __name__ == "__main__":
    # ValueCenter({"helpfulness":0.4, "harmlessness":0.3, "honesty":0.2, "fairness":0.1})
    value_weights = np.array([0.4, 0.3, 0.2, 0.1], dtype=np.float32)
    input_dim = 32   # embedding dim from the "language model"
    batch = 8        # number of embeddings to score

    key = jax.random.PRNGKey(0)
    k_params, k_x = jax.random.split(key)
    params = make_alignment_head_params(k_params, input_dim, value_weights)
    x = jax.random.normal(k_x, (batch, input_dim), jnp.float32)

    scores, overall = alignment_head_forward(x, params)
    scores, overall = jax.block_until_ready((scores, overall))

    w1, b1 = params["w1"], params["b1"]
    w2, b2 = params["w2"], params["b2"]
    w3, b3 = params["w3"], params["b3"]
    V = params["value_dim"]

    # Reference matching the kernel's numerics (f32 layer 1, bf16 operands for layers 2/3).
    h1 = jnp.maximum(jnp.dot(x, w1, preferred_element_type=jnp.float32) + b1, 0.0)
    h2 = jnp.maximum(jnp.dot(h1.astype(jnp.bfloat16), w2,
                             preferred_element_type=jnp.float32) + b2, 0.0)
    z = jnp.dot(h2.astype(jnp.bfloat16), w3, preferred_element_type=jnp.float32) + b3
    scores_ref = jax.nn.sigmoid(z)[:, :V]
    np.testing.assert_allclose(np.asarray(scores), np.asarray(scores_ref), rtol=1e-2, atol=1e-2)

    # Pure-f32 module semantics (nn.Sequential in float32), loose check on the bf16 fast path.
    h1f = jnp.maximum(x @ w1 + b1, 0.0)
    h2f = jnp.maximum(h1f @ w2.astype(jnp.float32) + b2, 0.0)
    scores_f32 = jax.nn.sigmoid(h2f @ w3.astype(jnp.float32) + b3)[:, :V]
    np.testing.assert_allclose(np.asarray(scores), np.asarray(scores_f32), rtol=5e-2, atol=5e-2)

    # Fused get_overall_alignment matches a post-hoc weighted average of the scores.
    vw_norm = value_weights / value_weights.sum()
    overall_ref = jnp.sum(scores * jnp.asarray(vw_norm), axis=-1)
    np.testing.assert_allclose(np.asarray(overall), np.asarray(overall_ref), rtol=1e-5, atol=1e-6)

    print("KERNEL_OK")
</pallas_src>

<mosaic_0001>
module attributes {stable_mosaic.version = 11 : i64} {
  func.func @alignment_head_kernel(%arg0: i32, %arg1: memref<8x32xf32, #tpu.memory_space<vmem>>, %arg2: memref<32x256xf32, #tpu.memory_space<vmem>>, %arg3: memref<1x256xf32, #tpu.memory_space<vmem>>, %arg4: memref<256x128xbf16, #tpu.memory_space<vmem>>, %arg5: memref<1x128xf32, #tpu.memory_space<vmem>>, %arg6: memref<128x8xbf16, #tpu.memory_space<vmem>>, %arg7: memref<1x8xf32, #tpu.memory_space<vmem>>, %arg8: memref<1x8xf32, #tpu.memory_space<vmem>>, %arg9: memref<8x8xf32, #tpu.memory_space<vmem>>) attributes {dimension_semantics = [#tpu.dimension_semantics<parallel>], iteration_bounds = array<i64: 1>, scalar_prefetch = 0 : i64, scratch_operands = 0 : i64, tpu.core_type = #tpu.core_type<tc>, window_params = [{transform_indices = @transform_0, window_bounds = array<i64: 8, 32>}, {pipeline_mode = #tpu.pipeline_mode<synchronous>, transform_indices = @transform_1, window_bounds = array<i64: 32, 256>}, {pipeline_mode = #tpu.pipeline_mode<synchronous>, transform_indices = @transform_2, window_bounds = array<i64: 1, 256>}, {pipeline_mode = #tpu.pipeline_mode<synchronous>, transform_indices = @transform_3, window_bounds = array<i64: 256, 128>}, {pipeline_mode = #tpu.pipeline_mode<synchronous>, transform_indices = @transform_4, window_bounds = array<i64: 1, 128>}, {pipeline_mode = #tpu.pipeline_mode<synchronous>, transform_indices = @transform_5, window_bounds = array<i64: 128, 8>}, {pipeline_mode = #tpu.pipeline_mode<synchronous>, transform_indices = @transform_6, window_bounds = array<i64: 1, 8>}, {pipeline_mode = #tpu.pipeline_mode<synchronous>, transform_indices = @transform_7, window_bounds = array<i64: 1, 8>}, {transform_indices = @transform_8, window_bounds = array<i64: 8, 8>}]} {
    %c0 = arith.constant 0 : index
    %c0_0 = arith.constant 0 : index
    %0 = vector.load %arg1[%c0, %c0_0] : memref<8x32xf32, #tpu.memory_space<vmem>>, vector<8x32xf32>
    %c0_1 = arith.constant 0 : index
    %c0_2 = arith.constant 0 : index
    %1 = vector.load %arg2[%c0_1, %c0_2] : memref<32x256xf32, #tpu.memory_space<vmem>>, vector<32x256xf32>
    %cst = arith.constant dense<0.000000e+00> : vector<8x256xf32>
    %2 = tpu.matmul %0, %1, %cst {dimension_numbers = #tpu.dot_dimension_numbers<[1], [0], [0], [1], [0, 0, 1, 1], [], []>} : vector<8x32xf32>, vector<32x256xf32>, vector<8x256xf32> -> vector<8x256xf32>
    %c0_3 = arith.constant 0 : index
    %c0_4 = arith.constant 0 : index
    %3 = vector.load %arg3[%c0_3, %c0_4] : memref<1x256xf32, #tpu.memory_space<vmem>>, vector<1x256xf32>
    %4 = vector.broadcast %3 : vector<1x256xf32> to vector<8x256xf32>
    %5 = arith.addf %2, %4 : vector<8x256xf32>
    %cst_5 = arith.constant 0.000000e+00 : f32
    %6 = vector.broadcast %cst_5 : f32 to vector<8x256xf32>
    %7 = arith.maximumf %5, %6 : vector<8x256xf32>
    %8 = arith.truncf %7 : vector<8x256xf32> to vector<8x256xbf16>
    %c0_6 = arith.constant 0 : index
    %c0_7 = arith.constant 0 : index
    %9 = vector.load %arg4[%c0_6, %c0_7] : memref<256x128xbf16, #tpu.memory_space<vmem>>, vector<256x128xbf16>
    %cst_8 = arith.constant dense<0.000000e+00> : vector<8x128xf32>
    %10 = tpu.matmul %8, %9, %cst_8 {dimension_numbers = #tpu.dot_dimension_numbers<[1], [0], [0], [1], [0, 0, 1, 1], [], []>} : vector<8x256xbf16>, vector<256x128xbf16>, vector<8x128xf32> -> vector<8x128xf32>
    %c0_9 = arith.constant 0 : index
    %c0_10 = arith.constant 0 : index
    %11 = vector.load %arg5[%c0_9, %c0_10] : memref<1x128xf32, #tpu.memory_space<vmem>>, vector<1x128xf32>
    %12 = vector.broadcast %11 : vector<1x128xf32> to vector<8x128xf32>
    %13 = arith.addf %10, %12 : vector<8x128xf32>
    %cst_11 = arith.constant 0.000000e+00 : f32
    %14 = vector.broadcast %cst_11 : f32 to vector<8x128xf32>
    %15 = arith.maximumf %13, %14 : vector<8x128xf32>
    %16 = arith.truncf %15 : vector<8x128xf32> to vector<8x128xbf16>
    %c0_12 = arith.constant 0 : index
    %c0_13 = arith.constant 0 : index
    %17 = vector.load %arg6[%c0_12, %c0_13] : memref<128x8xbf16, #tpu.memory_space<vmem>>, vector<128x8xbf16>
    %cst_14 = arith.constant dense<0.000000e+00> : vector<8x8xf32>
    %18 = tpu.matmul %16, %17, %cst_14 {dimension_numbers = #tpu.dot_dimension_numbers<[1], [0], [0], [1], [0, 0, 1, 1], [], []>} : vector<8x128xbf16>, vector<128x8xbf16>, vector<8x8xf32> -> vector<8x8xf32>
    %c0_15 = arith.constant 0 : index
    %c0_16 = arith.constant 0 : index
    %19 = vector.load %arg7[%c0_15, %c0_16] : memref<1x8xf32, #tpu.memory_space<vmem>>, vector<1x8xf32>
    %20 = vector.broadcast %19 : vector<1x8xf32> to vector<8x8xf32>
    %21 = arith.addf %18, %20 : vector<8x8xf32>
    %22 = arith.negf %21 : vector<8x8xf32>
    %23 = math.exp %22 : vector<8x8xf32>
    %cst_17 = arith.constant 1.000000e+00 : f32
    %24 = vector.broadcast %cst_17 : f32 to vector<8x8xf32>
    %25 = arith.addf %24, %23 : vector<8x8xf32>
    %26 = arith.divf %24, %25 : vector<8x8xf32>
    %c0_18 = arith.constant 0 : index
    %c0_19 = arith.constant 0 : index
    %27 = vector.load %arg8[%c0_18, %c0_19] : memref<1x8xf32, #tpu.memory_space<vmem>>, vector<1x8xf32>
    %28 = vector.broadcast %27 : vector<1x8xf32> to vector<8x8xf32>
    %29 = arith.mulf %26, %28 : vector<8x8xf32>
    %cst_20 = arith.constant dense<0.000000e+00> : vector<8xf32>
    %30 = vector.multi_reduction <add>, %29, %cst_20 [1] : vector<8x8xf32> to vector<8xf32>
    %31 = vector.shape_cast %30 : vector<8xf32> to vector<8x1xf32>
    %32 = tpu.iota {dimensions = array<i32: 1>} : vector<8x8xi32>
    %c4_i32 = arith.constant 4 : i32
    %33 = vector.broadcast %c4_i32 : i32 to vector<8x8xi32>
    %34 = arith.cmpi eq, %32, %33 : vector<8x8xi32>
    %c4_i32_21 = arith.constant 4 : i32
    %35 = vector.broadcast %c4_i32_21 : i32 to vector<8x8xi32>
    %36 = arith.cmpi slt, %32, %35 : vector<8x8xi32>
    %cst_22 = arith.constant 0.000000e+00 : f32
    %37 = vector.broadcast %cst_22 : f32 to vector<8x8xf32>
    %38 = arith.select %36, %26, %37 : vector<8x8xi1>, vector<8x8xf32>
    %39 = vector.shape_cast %31 : vector<8x1xf32> to vector<8x1xf32>
    %40 = vector.broadcast %39 : vector<8x1xf32> to vector<8x8xf32>
    %41 = arith.select %34, %40, %38 : vector<8x8xi1>, vector<8x8xf32>
    %c0_23 = arith.constant 0 : index
    %c0_24 = arith.constant 0 : index
    %42 = vector.load %arg9[%c0_23, %c0_24] : memref<8x8xf32, #tpu.memory_space<vmem>>, vector<8x8xf32>
    tpu.vector_store %arg9[%c0_23, %c0_24], %41 {strides = array<i32>} : memref<8x8xf32, #tpu.memory_space<vmem>>, vector<8x8xf32>,
    return
  }
  func.func @transform_0(%arg0: i32) -> (i32, i32) {
    %c0_i32 = arith.constant 0 : i32
    %c0_i32_0 = arith.constant 0 : i32
    return %arg0, %c0_i32 : i32, i32
  }
  func.func @transform_1(%arg0: i32) -> (i32, i32) {
    %c0_i32 = arith.constant 0 : i32
    %c0_i32_0 = arith.constant 0 : i32
    %c0_i32_1 = arith.constant 0 : i32
    return %c0_i32, %c0_i32_0 : i32, i32
  }
  func.func @transform_2(%arg0: i32) -> (i32, i32) {
    %c0_i32 = arith.constant 0 : i32
    %c0_i32_0 = arith.constant 0 : i32
    %c0_i32_1 = arith.constant 0 : i32
    return %c0_i32, %c0_i32_0 : i32, i32
  }
  func.func @transform_3(%arg0: i32) -> (i32, i32) {
    %c0_i32 = arith.constant 0 : i32
    %c0_i32_0 = arith.constant 0 : i32
    %c0_i32_1 = arith.constant 0 : i32
    return %c0_i32, %c0_i32_0 : i32, i32
  }
  func.func @transform_4(%arg0: i32) -> (i32, i32) {
    %c0_i32 = arith.constant 0 : i32
    %c0_i32_0 = arith.constant 0 : i32
    %c0_i32_1 = arith.constant 0 : i32
    return %c0_i32, %c0_i32_0 : i32, i32
  }
  func.func @transform_5(%arg0: i32) -> (i32, i32) {
    %c0_i32 = arith.constant 0 : i32
    %c0_i32_0 = arith.constant 0 : i32
    %c0_i32_1 = arith.constant 0 : i32
    return %c0_i32, %c0_i32_0 : i32, i32
  }
  func.func @transform_6(%arg0: i32) -> (i32, i32) {
    %c0_i32 = arith.constant 0 : i32
    %c0_i32_0 = arith.constant 0 : i32
    %c0_i32_1 = arith.constant 0 : i32
    return %c0_i32, %c0_i32_0 : i32, i32
  }
  func.func @transform_7(%arg0: i32) -> (i32, i32) {
    %c0_i32 = arith.constant 0 : i32
    %c0_i32_0 = arith.constant 0 : i32
    %c0_i32_1 = arith.constant 0 : i32
    return %c0_i32, %c0_i32_0 : i32, i32
  }
  func.func @transform_8(%arg0: i32) -> (i32, i32) {
    %c0_i32 = arith.constant 0 : i32
    %c0_i32_0 = arith.constant 0 : i32
    return %arg0, %c0_i32 : i32, i32
  }
}

</mosaic_0001>

<llo_original>
// kernel: tpu_custom_call.1
$region0: #{tpu_custom_call.1}
  #allocation0 [shape = 'u32[]', space=smem, size = 0x4, offset = 0x4, fixed_abs, tag = 'smem constant byte address 0x4 - core index']
  #allocation1 [shape = 'u32[144,128]{1,0:T(1,128)}', space=vmem, size = 0x12000, scoped, tag = 'internal scratch']
  %s0 = inlined_call_operand.hbm [shape: f32[8,32], index: 0, kind: input, shape index: {}]
  %s1 = inlined_call_operand.vmem [shape: f32[32,256], index: 1, kind: input, shape index: {}]
  %s2 = inlined_call_operand.vmem [shape: f32[1,256], index: 2, kind: input, shape index: {}]
  %s3 = inlined_call_operand.hbm [shape: bf16[256,128], index: 3, kind: input, shape index: {}]
  %s4 = inlined_call_operand.vmem [shape: f32[1,128], index: 4, kind: input, shape index: {}]
  %s5 = inlined_call_operand.vmem [shape: bf16[128,8], index: 5, kind: input, shape index: {}]
  %s6 = inlined_call_operand.vmem [shape: f32[1,8], index: 6, kind: input, shape index: {}]
  %s7 = inlined_call_operand.vmem [shape: f32[1,8], index: 7, kind: input, shape index: {}]
  %s8 = inlined_call_operand.hbm [shape: f32[8,8], index: 8, kind: output, shape index: {}]
  %s9 = sld [smem:[#allocation0]]
  $region50: #{tpu_custom_call.1} parent=0
    _
  %s11 = ssub.s32 1, %s9
  %s12 = scalar_select 0, %s11, %s9
  $region1: #{tpu_custom_call.1} parent=0
    #allocation2 [shape = 'u8[4096]{0}', space=vmem, size = 0x1000, scoped, tag = 'input window, operand 0, single buffered']
    #allocation3 [shape = 's32[1]{0}', space=sflag, size = 0x4, scoped, tag = 'scoped memory for tpu_custom_call.1']
    #allocation4 [shape = 's32[1]{0}', space=sflag, size = 0x4, scoped, tag = 'scoped memory for tpu_custom_call.1']
    #allocation5 [shape = 'u8[65536]{0}', space=vmem, size = 0x10000, scoped, tag = 'input window, operand 3, single buffered']
    #allocation6 [shape = 's32[1]{0}', space=sflag, size = 0x4, scoped, tag = 'scoped memory for tpu_custom_call.1']
    #allocation7 [shape = 'u8[4096]{0}', space=vmem, size = 0x1000, scoped, tag = 'output window, operand 0, single buffered']
    %13 = vsyncpa [#allocation3], 0
    %14 = vsyncpa [#allocation6], 0
    %15 = vsyncpa [#allocation4], 0
    // Predicated region
    $region2: #{tpu_custom_call.1} parent=1 // pred_check
      _
    $region3: #{tpu_custom_call.1} parent=1 // pred_check_branch
      %17 = sbr.rel (0) target = $region5
    $region4: #{tpu_custom_call.1} parent=1 // pred_region
      %s19 = ssub.s32 128, 128
      %20 = vsyncadd [#allocation3], %s19
      %s22 = sshll.u32 [#allocation2], 4
      %s23 = int_to_ptr.vmem [resolvable:$true] %s22
      %25 = dma.hbm_to_vmem [thread:$0]  %s0, 128, %s23, [#allocation3]
    $region5: #{tpu_custom_call.1} parent=1 // pred_fallthru
      _
    // Predicated region
    $region6: #{tpu_custom_call.1} parent=1 // pred_check
      _
    $region7: #{tpu_custom_call.1} parent=1 // pred_check_branch
      %27 = sbr.rel (0) target = $region9
    $region8: #{tpu_custom_call.1} parent=1 // pred_region
      _
    $region9: #{tpu_custom_call.1} parent=1 // pred_fallthru
      _
    // Predicated region
    $region10: #{tpu_custom_call.1} parent=1 // pred_check
      _
    $region11: #{tpu_custom_call.1} parent=1 // pred_check_branch
      %29 = sbr.rel (0) target = $region13
    $region12: #{tpu_custom_call.1} parent=1 // pred_region
      _
    $region13: #{tpu_custom_call.1} parent=1 // pred_fallthru
      _
    // Predicated region
    $region14: #{tpu_custom_call.1} parent=1 // pred_check
      _
    $region15: #{tpu_custom_call.1} parent=1 // pred_check_branch
      %31 = sbr.rel (0) target = $region17
    $region16: #{tpu_custom_call.1} parent=1 // pred_region
      %s33 = ssub.s32 2048, 2048
      %34 = vsyncadd [#allocation6], %s33
      %s35 = sshll.u32 [#allocation5], 4
      %s36 = int_to_ptr.vmem [resolvable:$true] %s35
      %41 = dma.hbm_to_vmem [thread:$0]  %s3, 2048, %s36, [#allocation6], 64, 64, 4
    $region17: #{tpu_custom_call.1} parent=1 // pred_fallthru
      _
    // Predicated region
    $region18: #{tpu_custom_call.1} parent=1 // pred_check
      _
    $region19: #{tpu_custom_call.1} parent=1 // pred_check_branch
      %43 = sbr.rel (0) target = $region21
    $region20: #{tpu_custom_call.1} parent=1 // pred_region
      _
    $region21: #{tpu_custom_call.1} parent=1 // pred_fallthru
      _
    // Predicated region
    $region22: #{tpu_custom_call.1} parent=1 // pred_check
      _
    $region23: #{tpu_custom_call.1} parent=1 // pred_check_branch
      %45 = sbr.rel (0) target = $region25
    $region24: #{tpu_custom_call.1} parent=1 // pred_region
      _
    $region25: #{tpu_custom_call.1} parent=1 // pred_fallthru
      _
    // Predicated region
    $region26: #{tpu_custom_call.1} parent=1 // pred_check
      _
    $region27: #{tpu_custom_call.1} parent=1 // pred_check_branch
      %47 = sbr.rel (0) target = $region29
    $region28: #{tpu_custom_call.1} parent=1 // pred_region
      _
    $region29: #{tpu_custom_call.1} parent=1 // pred_fallthru
      _
    // Predicated region
    $region30: #{tpu_custom_call.1} parent=1 // pred_check
      _
    $region31: #{tpu_custom_call.1} parent=1 // pred_check_branch
      %49 = sbr.rel (0) target = $region33
    $region32: #{tpu_custom_call.1} parent=1 // pred_region
      _
    $region33: #{tpu_custom_call.1} parent=1 // pred_fallthru
      _
    // Predicated region
    $region34: #{tpu_custom_call.1} parent=1 // pred_check
      _
    $region35: #{tpu_custom_call.1} parent=1 // pred_check_branch
      %51 = sbr.rel (0) target = $region37
    $region36: #{tpu_custom_call.1} parent=1 // pred_region
      %52 = dma.done [#allocation3], 128
    $region37: #{tpu_custom_call.1} parent=1 // pred_fallthru
      _
    // Predicated region
    $region38: #{tpu_custom_call.1} parent=1 // pred_check
      _
    $region39: #{tpu_custom_call.1} parent=1 // pred_check_branch
      %54 = sbr.rel (0) target = $region41
    $region40: #{tpu_custom_call.1} parent=1 // pred_region
      %55 = dma.done [#allocation6], 2048
    $region41: #{tpu_custom_call.1} parent=1 // pred_fallthru
      _
    %v57 = vld [vmem:[#allocation2] sm:$0xff]
    %v58 = vld [vmem:[%s1] sm:$0xff]
    %v59 = vld [vmem:[%s1 + $0x8] sm:$0xff]
    %v60 = vld [vmem:[%s1 + $0x10] sm:$0xff]
    %v61 = vld [vmem:[%s1 + $0x18] sm:$0xff]
    %v62 = vld [vmem:[%s1 + $0x20] sm:$0xff]
    %v63 = vld [vmem:[%s1 + $0x28] sm:$0xff]
    %v64 = vld [vmem:[%s1 + $0x30] sm:$0xff]
    %v65 = vld [vmem:[%s1 + $0x38] sm:$0xff]
    %v66 = vld [vmem:[%s2] sm:$0x3]
    %v68 = vlaneseq
    %v69 = vshrl.u32 %v68, 7
    %v70 = vsub.s32 0, %v69
    %v71 = vrot.slane %v66, %v70
    %v72 = vlaneseq
    %v73 = vshrl.u32 %v72, 7
    %v74 = vsub.s32 1, %v73
    %v75 = vrot.slane %v66, %v74
    %vm78 = vcmask 261120
    %v80 = vsel %vm78, %v57, 0
    %82 = vmatprep.subr.mxu0 %v59
    %83 = vmatpush1.msra.mxu0 %v58
    %84 = vmatprep.subr.mxu0 %v61
    %85 = vmatpush1.msra.mxu0 %v60
    %86 = vmatprep.subr.mxu0 %v63
    %87 = vmatpush1.msra.mxu0 %v62
    %88 = vmatprep.subr.mxu0 %v65
    %89 = vmatpush1.msra.mxu0 %v64
    %90 = vmatprep.subr.mxu0 0.0
    %91 = vmatpush1.msra.mxu0 0.0
    %92 = vmatprep.subr.mxu0 0.0
    %93 = vmatpush1.msra.mxu0 0.0
    %94 = vmatprep.subr.mxu0 0.0
    %95 = vmatpush1.msra.mxu0 0.0
    %96 = vmatprep.subr.mxu0 0.0
    %97 = vmatpush1.msra.mxu0 0.0
    %98 = vmatprep.subr.mxu0 0.0
    %99 = vmatpush1.msra.mxu0 0.0
    %100 = vmatprep.subr.mxu0 0.0
    %101 = vmatpush1.msra.mxu0 0.0
    %102 = vmatprep.subr.mxu0 0.0
    %103 = vmatpush1.msra.mxu0 0.0
    %104 = vmatprep.subr.mxu0 0.0
    %105 = vmatpush1.msra.mxu0 0.0
    %106 = vmatprep.subr.mxu0 0.0
    %107 = vmatpush1.msra.mxu0 0.0
    %108 = vmatprep.subr.mxu0 0.0
    %109 = vmatpush1.msra.mxu0 0.0
    %110 = vmatprep.subr.mxu0 0.0
    %111 = vmatpush1.msra.mxu0 0.0
    %112 = vmatprep.subr.mxu0 0.0
    %113 = vmatpush1.msra.mxu0 0.0
    %114 = vmatprep.subr.mxu0 0.0
    %115 = vmatpush1.msra.mxu0 0.0
    %116 = vmatprep.subr.mxu0 0.0
    %117 = vmatpush1.msra.mxu0 0.0
    %118 = vmatprep.subr.mxu0 0.0
    %119 = vmatpush1.msra.mxu0 0.0
    %120 = vmatprep.subr.mxu0 0.0
    %121 = vmatpush1.msra.mxu0 0.0
    %122 = vmatprep.subr.mxu0 0.0
    %123 = vmatpush1.msra.mxu0 0.0
    %124 = vmatprep.subr.mxu0 0.0
    %125 = vmatpush1.msra.mxu0 0.0
    %126 = vmatprep.subr.mxu0 0.0
    %127 = vmatpush1.msra.mxu0 0.0
    %128 = vmatprep.subr.mxu0 0.0
    %129 = vmatpush1.msra.mxu0 0.0
    %130 = vmatprep.subr.mxu0 0.0
    %131 = vmatpush1.msra.mxu0 0.0
    %132 = vmatprep.subr.mxu0 0.0
    %133 = vmatpush1.msra.mxu0 0.0
    %134 = vmatprep.subr.mxu0 0.0
    %135 = vmatpush1.msra.mxu0 0.0
    %136 = vmatprep.subr.mxu0 0.0
    %137 = vmatpush1.msra.mxu0 0.0
    %138 = vmatprep.subr.mxu0 0.0
    %139 = vmatpush1.msra.mxu0 0.0
    %140 = vmatprep.subr.mxu0 0.0
    %141 = vmatpush1.msra.mxu0 0.0
    %142 = vmatprep.subr.mxu0 0.0
    %143 = vmatpush1.msra.mxu0 0.0
    %144 = vmatprep.subr.mxu0 0.0
    %145 = vmatpush1.msra.mxu0 0.0
    %146 = vmatprep.mubr.f32.mxu0 0.0
    %147 = vmatmul.mubr.f32.gmra.mrb[0].mxu0 %v80
    %v148 = vpop.f32.mrb[0].mxu0
    %v149 = vadd.f32 %v71, %v148
    %v150 = vpop.f32.mrb[0].mxu0
    %v151 = vadd.f32 %v75, %v150
    %152 = vdwg.mxu0
    %v153 = vmax.f32 %v149, 0.0
    %v154 = vmax.f32 %v151, 0.0
    %v155 = vpack.c.bf16 %v153, %v153
    %v156 = vpack.c.bf16 %v154, %v154
    %v157 = vld [vmem:[#allocation5] sm:$0xf]
    %v158 = vld [vmem:[#allocation5 + $0x4] sm:$0xf]
    %v159 = vld [vmem:[#allocation5 + $0x8] sm:$0xf]
    %v160 = vld [vmem:[#allocation5 + $0xc] sm:$0xf]
    %v161 = vld [vmem:[#allocation5 + $0x10] sm:$0xf]
    %v162 = vld [vmem:[#allocation5 + $0x14] sm:$0xf]
    %v163 = vld [vmem:[#allocation5 + $0x18] sm:$0xf]
    %v164 = vld [vmem:[#allocation5 + $0x1c] sm:$0xf]
    %v165 = vld [vmem:[#allocation5 + $0x20] sm:$0xf]
    %v166 = vld [vmem:[#allocation5 + $0x24] sm:$0xf]
    %v167 = vld [vmem:[#allocation5 + $0x28] sm:$0xf]
    %v168 = vld [vmem:[#allocation5 + $0x2c] sm:$0xf]
    %v169 = vld [vmem:[#allocation5 + $0x30] sm:$0xf]
    %v170 = vld [vmem:[#allocation5 + $0x34] sm:$0xf]
    %v171 = vld [vmem:[#allocation5 + $0x38] sm:$0xf]
    %v172 = vld [vmem:[#allocation5 + $0x3c] sm:$0xf]
    %v173 = vld [vmem:[#allocation5 + $0x40] sm:$0xf]
    %v174 = vld [vmem:[#allocation5 + $0x44] sm:$0xf]
    %v175 = vld [vmem:[#allocation5 + $0x48] sm:$0xf]
    %v176 = vld [vmem:[#allocation5 + $0x4c] sm:$0xf]
    %v177 = vld [vmem:[#allocation5 + $0x50] sm:$0xf]
    %v178 = vld [vmem:[#allocation5 + $0x54] sm:$0xf]
    %v179 = vld [vmem:[#allocation5 + $0x58] sm:$0xf]
    %v180 = vld [vmem:[#allocation5 + $0x5c] sm:$0xf]
    %v181 = vld [vmem:[#allocation5 + $0x60] sm:$0xf]
    %v182 = vld [vmem:[#allocation5 + $0x64] sm:$0xf]
    %v183 = vld [vmem:[#allocation5 + $0x68] sm:$0xf]
    %v184 = vld [vmem:[#allocation5 + $0x6c] sm:$0xf]
    %v185 = vld [vmem:[#allocation5 + $0x70] sm:$0xf]
    %v186 = vld [vmem:[#allocation5 + $0x74] sm:$0xf]
    %v187 = vld [vmem:[#allocation5 + $0x78] sm:$0xf]
    %v188 = vld [vmem:[#allocation5 + $0x7c] sm:$0xf]
    %v189 = vld [vmem:[%s4] sm:$0x1]
    %v191 = vlaneseq
    %v192 = vshrl.u32 %v191, 7
    %v193 = vsub.s32 0, %v192
    %v194 = vrot.slane %v189, %v193
    %v228 = vunpack.c.l.b16 %v157
    %v229 = vunpack.c.l.b16 %v158
    %v230 = vunpack.c.l.b16 %v159
    %v231 = vunpack.c.l.b16 %v160
    %v232 = vunpack.c.l.b16 %v161
    %v233 = vunpack.c.l.b16 %v162
    %v234 = vunpack.c.l.b16 %v163
    %v235 = vunpack.c.l.b16 %v164
    %v236 = vunpack.c.l.b16 %v165
    %v237 = vunpack.c.l.b16 %v166
    %v238 = vunpack.c.l.b16 %v167
    %v239 = vunpack.c.l.b16 %v168
    %v240 = vunpack.c.l.b16 %v169
    %v241 = vunpack.c.l.b16 %v170
    %v242 = vunpack.c.l.b16 %v171
    %v243 = vunpack.c.l.b16 %v172
    %v244 = vunpack.c.l.b16 %v173
    %v245 = vunpack.c.l.b16 %v174
    %v246 = vunpack.c.l.b16 %v175
    %v247 = vunpack.c.l.b16 %v176
    %v248 = vunpack.c.l.b16 %v177
    %v249 = vunpack.c.l.b16 %v178
    %v250 = vunpack.c.l.b16 %v179
    %v251 = vunpack.c.l.b16 %v180
    %v252 = vunpack.c.l.b16 %v181
    %v253 = vunpack.c.l.b16 %v182
    %v254 = vunpack.c.l.b16 %v183
    %v255 = vunpack.c.l.b16 %v184
    %v256 = vunpack.c.l.b16 %v185
    %v257 = vunpack.c.l.b16 %v186
    %v258 = vunpack.c.l.b16 %v187
    %v259 = vunpack.c.l.b16 %v188
    %v260 = vpack.c.b16 %v229, %v228
    %v261 = vpack.c.b16 %v231, %v230
    %v262 = vpack.c.b16 %v233, %v232
    %v263 = vpack.c.b16 %v235, %v234
    %v264 = vpack.c.b16 %v237, %v236
    %v265 = vpack.c.b16 %v239, %v238
    %v266 = vpack.c.b16 %v241, %v240
    %v267 = vpack.c.b16 %v243, %v242
    %v268 = vpack.c.b16 %v245, %v244
    %v269 = vpack.c.b16 %v247, %v246
    %v270 = vpack.c.b16 %v249, %v248
    %v271 = vpack.c.b16 %v251, %v250
    %v272 = vpack.c.b16 %v253, %v252
    %v273 = vpack.c.b16 %v255, %v254
    %v274 = vpack.c.b16 %v257, %v256
    %v275 = vpack.c.b16 %v259, %v258
    %292 = vmatprep.subr.bf16.mxu0 0
    %293 = vmatpush1.bf16.msra.mxu0 %v260
    %294 = vmatprep.subr.bf16.mxu0 0
    %295 = vmatpush1.bf16.msra.mxu0 %v261
    %296 = vmatprep.subr.bf16.mxu0 0
    %297 = vmatpush1.bf16.msra.mxu0 %v262
    %298 = vmatprep.subr.bf16.mxu0 0
    %299 = vmatpush1.bf16.msra.mxu0 %v263
    %300 = vmatprep.subr.bf16.mxu0 0
    %301 = vmatpush1.bf16.msra.mxu0 %v264
    %302 = vmatprep.subr.bf16.mxu0 0
    %303 = vmatpush1.bf16.msra.mxu0 %v265
    %304 = vmatprep.subr.bf16.mxu0 0
    %305 = vmatpush1.bf16.msra.mxu0 %v266
    %306 = vmatprep.subr.bf16.mxu0 0
    %307 = vmatpush1.bf16.msra.mxu0 %v267
    %308 = vmatprep.subr.bf16.mxu0 0
    %309 = vmatpush1.bf16.msra.mxu0 %v268
    %310 = vmatprep.subr.bf16.mxu0 0
    %311 = vmatpush1.bf16.msra.mxu0 %v269
    %312 = vmatprep.subr.bf16.mxu0 0
    %313 = vmatpush1.bf16.msra.mxu0 %v270
    %314 = vmatprep.subr.bf16.mxu0 0
    %315 = vmatpush1.bf16.msra.mxu0 %v271
    %316 = vmatprep.subr.bf16.mxu0 0
    %317 = vmatpush1.bf16.msra.mxu0 %v272
    %318 = vmatprep.subr.bf16.mxu0 0
    %319 = vmatpush1.bf16.msra.mxu0 %v273
    %320 = vmatprep.subr.bf16.mxu0 0
    %321 = vmatpush1.bf16.msra.mxu0 %v274
    %322 = vmatprep.subr.bf16.mxu0 0
    %323 = vmatpush1.bf16.msra.mxu0 %v275
    %324 = vmatprep.mubr.bf16.mxu0 %v156
    %325 = vmatmul.mubr.bf16.gmra.mrb[0].mxu0 %v155
    %v326 = vpop.f32.mrb[0].mxu0
    %v327 = vadd.f32 %v194, %v326
    %v328 = vpop.f32.mrb[0].mxu0
    %v329 = vpop.f32.mrb[0].mxu0
    %v330 = vpop.f32.mrb[0].mxu0
    %331 = vdwg.mxu0
    %v332 = vmax.f32 %v327, 0.0
    %v333 = vpack.c.bf16 %v332, %v332
    %v334 = vld [vmem:[%s5] sm:$0xf]
    %v335 = vld [vmem:[%s5 + $0x4] sm:$0xf]
    %v336 = vld [vmem:[%s5 + $0x8] sm:$0xf]
    %v337 = vld [vmem:[%s5 + $0xc] sm:$0xf]
    %v338 = vld [vmem:[%s5 + $0x10] sm:$0xf]
    %v339 = vld [vmem:[%s5 + $0x14] sm:$0xf]
    %v340 = vld [vmem:[%s5 + $0x18] sm:$0xf]
    %v341 = vld [vmem:[%s5 + $0x1c] sm:$0xf]
    %v342 = vld [vmem:[%s5 + $0x20] sm:$0xf]
    %v343 = vld [vmem:[%s5 + $0x24] sm:$0xf]
    %v344 = vld [vmem:[%s5 + $0x28] sm:$0xf]
    %v345 = vld [vmem:[%s5 + $0x2c] sm:$0xf]
    %v346 = vld [vmem:[%s5 + $0x30] sm:$0xf]
    %v347 = vld [vmem:[%s5 + $0x34] sm:$0xf]
    %v348 = vld [vmem:[%s5 + $0x38] sm:$0xf]
    %v349 = vld [vmem:[%s5 + $0x3c] sm:$0xf]
    %v350 = vld [vmem:[%s6] sm:$0x1]
    %v352 = vlaneseq
    %v353 = vshrl.u32 %v352, 7
    %v354 = vsub.s32 0, %v353
    %v355 = vrot.slane %v350, %v354
    %v373 = vunpack.c.l.b16 %v334
    %v374 = vunpack.c.l.b16 %v335
    %v375 = vunpack.c.l.b16 %v336
    %v376 = vunpack.c.l.b16 %v337
    %v377 = vunpack.c.l.b16 %v338
    %v378 = vunpack.c.l.b16 %v339
    %v379 = vunpack.c.l.b16 %v340
    %v380 = vunpack.c.l.b16 %v341
    %v381 = vunpack.c.l.b16 %v342
    %v382 = vunpack.c.l.b16 %v343
    %v383 = vunpack.c.l.b16 %v344
    %v384 = vunpack.c.l.b16 %v345
    %v385 = vunpack.c.l.b16 %v346
    %v386 = vunpack.c.l.b16 %v347
    %v387 = vunpack.c.l.b16 %v348
    %v388 = vunpack.c.l.b16 %v349
    %v389 = vpack.c.b16 %v374, %v373
    %v390 = vpack.c.b16 %v376, %v375
    %v391 = vpack.c.b16 %v378, %v377
    %v392 = vpack.c.b16 %v380, %v379
    %v393 = vpack.c.b16 %v382, %v381
    %v394 = vpack.c.b16 %v384, %v383
    %v395 = vpack.c.b16 %v386, %v385
    %v396 = vpack.c.b16 %v388, %v387
    %405 = vmatprep.subr.bf16.mxu0 0
    %406 = vmatpush1.bf16.msra.mxu0 %v389
    %407 = vmatprep.subr.bf16.mxu0 0
    %408 = vmatpush1.bf16.msra.mxu0 %v390
    %409 = vmatprep.subr.bf16.mxu0 0
    %410 = vmatpush1.bf16.msra.mxu0 %v391
    %411 = vmatprep.subr.bf16.mxu0 0
    %412 = vmatpush1.bf16.msra.mxu0 %v392
    %413 = vmatprep.subr.bf16.mxu0 0
    %414 = vmatpush1.bf16.msra.mxu0 %v393
    %415 = vmatprep.subr.bf16.mxu0 0
    %416 = vmatpush1.bf16.msra.mxu0 %v394
    %417 = vmatprep.subr.bf16.mxu0 0
    %418 = vmatpush1.bf16.msra.mxu0 %v395
    %419 = vmatprep.subr.bf16.mxu0 0
    %420 = vmatpush1.bf16.msra.mxu0 %v396
    %421 = vmatprep.subr.bf16.mxu0 0
    %422 = vmatpush1.bf16.msra.mxu0 0
    %423 = vmatprep.subr.bf16.mxu0 0
    %424 = vmatpush1.bf16.msra.mxu0 0
    %425 = vmatprep.subr.bf16.mxu0 0
    %426 = vmatpush1.bf16.msra.mxu0 0
    %427 = vmatprep.subr.bf16.mxu0 0
    %428 = vmatpush1.bf16.msra.mxu0 0
    %429 = vmatprep.subr.bf16.mxu0 0
    %430 = vmatpush1.bf16.msra.mxu0 0
    %431 = vmatprep.subr.bf16.mxu0 0
    %432 = vmatpush1.bf16.msra.mxu0 0
    %433 = vmatprep.subr.bf16.mxu0 0
    %434 = vmatpush1.bf16.msra.mxu0 0
    %435 = vmatprep.subr.bf16.mxu0 0
    %436 = vmatpush1.bf16.msra.mxu0 0
    %437 = vmatprep.mubr.bf16.mxu0 0
    %438 = vmatmul.mubr.bf16.gmra.mrb[0].mxu0 %v333
    %v439 = vpop.f32.mrb[0].mxu0
    %v440 = vadd.f32 %v355, %v439
    %v441 = vpop.f32.mrb[0].mxu0
    %v442 = vpop.f32.mrb[0].mxu0
    %v443 = vpop.f32.mrb[0].mxu0
    %444 = vdwg.mxu0
    %v445 = vxor.u32 %v440, 2147483648
    %v446 = vmul.f32 %v445, 1.442695
    %v447 = vpow.pop %v446
    %v448 = vadd.f32 %v447, 1.0
    %v449 = vrcp.pop %v448
    %v450 = vmul.f32 1.0, %v449
    %v451 = vld [vmem:[%s7] sm:$0x1]
    %v453 = vlaneseq
    %v454 = vshrl.u32 %v453, 7
    %v455 = vsub.s32 0, %v454
    %v456 = vrot.slane %v451, %v455
    %v458 = vmul.f32 %v450, %v456
    %vm459 = vcmask 64512
    %v460 = vsel %vm459, %v458, 0.0
    %461 = vadd.xlane.f32.xlu0 %v460
    %v462 = vpop.xlane.xlu0 %461
    %v463 = vlaneseq
    %v464 = vand.u32 %v463, 127
    %vm465 = vcmp.eq.s32.totalorder %v464, 4
    %vm466 = vcmp.lt.s32.totalorder %v464, 4
    %v467 = vsel %vm466, %v450, 0.0
    %v468 = vsel %vm465, %v462, %v467
    %469 = vst.msk [vmem:[#allocation7] sm:$0xff] %vm459, %v468
    // Predicated region
    $region42: #{tpu_custom_call.1} parent=1 // pred_check
      _
    $region43: #{tpu_custom_call.1} parent=1 // pred_check_branch
      %471 = sbr.rel (0) target = $region45
    $region44: #{tpu_custom_call.1} parent=1 // pred_region
      %s473 = ssub.s32 128, 128
      %474 = vsyncadd [#allocation4], %s473
      %s476 = sshll.u32 [#allocation7], 4
      %s477 = int_to_ptr.vmem [resolvable:$true] %s476
      %479 = dma.vmem_to_hbm [thread:$0]  %s477, 128, %s8, [#allocation4]
    $region45: #{tpu_custom_call.1} parent=1 // pred_fallthru
      _
    // Predicated region
    $region46: #{tpu_custom_call.1} parent=1 // pred_check
      _
    $region47: #{tpu_custom_call.1} parent=1 // pred_check_branch
      %481 = sbr.rel (0) target = $region49
    $region48: #{tpu_custom_call.1} parent=1 // pred_region
      %482 = dma.done [#allocation4], 128
    $region49: #{tpu_custom_call.1} parent=1 // pred_fallthru
      _
    %483 = vsyncpa [#allocation3], 1
    %484 = vsyncpa [#allocation6], 1
    %485 = vsyncpa [#allocation4], 1

</llo_original>
